<compile_context>
chip_gen: v5e
topology: v5e:2x2
jax: 0.10.0
libtpu: 0.0.40
codegen_flags: <defaults>
</compile_context>

<pallas_src>
import functools

import jax
import jax.numpy as jnp
import numpy as np
from jax.experimental import pallas as pl
from jax.experimental.pallas import tpu as pltpu


def _round_up(x, m):
    return (x + m - 1) // m * m


def _cdiv(a, b):
    return (a + b - 1) // b


# ---------------------------------------------------------------------------
# Pass 1: per-feature sum / sum-of-squares.
#   grid = (num_parts ['parallel'], tiles_per_part ['arbitrary'])
#   each part owns its own (1, H) accumulators (VMEM-resident output blocks).
# ---------------------------------------------------------------------------
def _bn_stats_kernel(x_ref, sum_ref, sq_ref, *, n_rows, block_rows,
                     tiles_per_part, need_mask):
    i = pl.program_id(1)

    @pl.when(i == 0)
    def _():
        sum_ref[...] = jnp.zeros_like(sum_ref)
        sq_ref[...] = jnp.zeros_like(sq_ref)

    x = x_ref[...].astype(jnp.float32)                        # [TR, H], f32 math
    if need_mask:
        c = pl.program_id(0)
        g = c * tiles_per_part + i                            # global tile id
        row = g * block_rows + jax.lax.broadcasted_iota(
            jnp.int32, (block_rows, 1), 0)
        x = jnp.where(row < n_rows, x, 0.0)                   # zero tail/dup rows

    sum_ref[...] += jnp.sum(x, axis=0, keepdims=True)         # [1, H]
    sq_ref[...] += jnp.sum(x * x, axis=0, keepdims=True)      # [1, H]


# ---------------------------------------------------------------------------
# Pass 2: o = x @ W' + b'   (BN affine pre-folded into W', b' by the wrapper)
# ---------------------------------------------------------------------------
def _matmul_bias_kernel(x_ref, w_ref, b_ref, o_ref):
    acc = jnp.dot(x_ref[...], w_ref[...],
                  preferred_element_type=jnp.float32)         # MXU, f32 acc
    o_ref[...] = (acc + b_ref[...]).astype(o_ref.dtype)       # bf16 lane-dense store


def _chip_budget():
    """(vmem_limit_bytes, max_block_rows) tuned per TPU generation."""
    try:
        cap = pltpu.get_tpu_info().vmem_capacity_bytes
        if cap >= (100 << 20):
            return 64 << 20, 1024        # v5e / v6e: 128 MiB physical VMEM
    except Exception:
        pass
    return 32 << 20, 512                 # v7x (64 MiB VMEM) / unknown: conservative


def dense_layer_forward(padded_output, gamma, beta, w_fc, *, eps=1e-5,
                        compute_dtype=jnp.bfloat16):
    """padded_output: [L, B, H]; gamma/beta: [H]; w_fc: [H, C] (nn.Linear weight
    transposed).  Returns [L, B, C] in padded_output.dtype."""
    L, B, H = padded_output.shape
    C = w_fc.shape[1]
    N = L * B
    out_dtype = padded_output.dtype

    vmem_limit, max_tr = _chip_budget()

    # ---- lane-dense padding of feature / class dims ------------------------
    # Pad H only when it is large and lane-sparse (padding tiny H just
    # inflates HBM bytes).
    H_pad = _round_up(H, 128) if (H % 128 != 0 and H >= 512) else H
    # Pad C to 128; tile the class dim in 512-wide 'parallel' blocks when big.
    TN = _round_up(C, 128) if C <= 1024 else 512
    C_pad = _round_up(C, TN)
    num_col_tiles = C_pad // TN

    # ---- row tiling ---------------------------------------------------------
    TR = _round_up(_cdiv(N, _cdiv(N, max_tr)), 8)             # minimize tail waste
    # Single-buffer the weight block once it is large enough for the second
    # buffer to matter (v7x VMEM budgeting); constant block index -> no cost.
    w_block_bytes = H_pad * TN * 2
    w_mode = pl.Buffered(1) if w_block_bytes > (4 << 20) else None
    w_bufs = 1 if w_mode is not None else 2

    def _pass2_bytes(tr):
        return (2 * tr * H_pad * 2            # x double buffer (bf16)
                + w_bufs * w_block_bytes      # weight buffer(s) (bf16)
                + 2 * tr * TN * 2             # output double buffer (bf16)
                + 2 * TN * 4)                 # bias
    while TR > 64 and _pass2_bytes(TR) > int(0.75 * vmem_limit):
        TR = _round_up(TR // 2, 8)

    num_tiles = _cdiv(N, TR)
    # Two partial stats accumulators: sharded across v7x's 2 TensorCores via
    # the leading 'parallel' axis; negligible extra work on single-TC chips.
    num_parts = 2
    tiles_per_part = _cdiv(num_tiles, num_parts)
    need_mask = (N % TR != 0) or (num_parts * tiles_per_part != num_tiles)

    # ---- single bf16 copy of x, streamed by both passes ---------------------
    x2d = padded_output.reshape(N, H)
    if H_pad != H:
        x2d = jnp.pad(x2d, ((0, 0), (0, H_pad - H)))
    x2d = x2d.astype(compute_dtype)                           # cast once

    w_f32 = w_fc.astype(jnp.float32)
    if H_pad != H or C_pad != C:
        w_f32 = jnp.pad(w_f32, ((0, H_pad - H), (0, C_pad - C)))
    gamma_p = jnp.pad(gamma.astype(jnp.float32), (0, H_pad - H))
    beta_p = jnp.pad(beta.astype(jnp.float32), (0, H_pad - H))

    # ---- pass 1: (sum, sum^2) -----------------------------------------------
    def x_stats_map(c, i):
        # clamp redundant tiles of the last part; they are fully masked anyway
        return (jnp.minimum(c * tiles_per_part + i, num_tiles - 1), 0)

    stats_kernel = functools.partial(
        _bn_stats_kernel, n_rows=N, block_rows=TR,
        tiles_per_part=tiles_per_part, need_mask=need_mask)

    part_sum, part_sq = pl.pallas_call(
        stats_kernel,
        out_shape=(jax.ShapeDtypeStruct((num_parts, 1, H_pad), jnp.float32),
                   jax.ShapeDtypeStruct((num_parts, 1, H_pad), jnp.float32)),
        grid=(num_parts, tiles_per_part),
        in_specs=[pl.BlockSpec((TR, H_pad), x_stats_map)],
        out_specs=(pl.BlockSpec((None, 1, H_pad), lambda c, i: (c, 0, 0)),
                   pl.BlockSpec((None, 1, H_pad), lambda c, i: (c, 0, 0))),
        compiler_params=pltpu.CompilerParams(
            dimension_semantics=("parallel", "arbitrary"),
            vmem_limit_bytes=vmem_limit),
    )(x2d)

    # ---- fold BN (batch stats, biased variance) into the weight -------------
    s = jnp.sum(part_sum, axis=0).reshape(H_pad)
    sq = jnp.sum(part_sq, axis=0).reshape(H_pad)
    mean = s / N
    var = jnp.maximum(sq / N - mean * mean, 0.0)
    rstd = jax.lax.rsqrt(var + eps)
    scale = gamma_p * rstd                                    # [H_pad]
    shift = beta_p - mean * scale                             # [H_pad]
    w_fold = (scale[:, None] * w_f32).astype(compute_dtype)   # [H_pad, C_pad] bf16
    b_fold = (shift @ w_f32).reshape(1, C_pad)                # [1, C_pad]   f32

    # ---- pass 2: o = x @ W' + b'  (row-tiled, col-tiled, fully parallel) ----
    if w_mode is not None:
        w_spec = pl.BlockSpec((H_pad, TN), lambda j, i: (0, j), pipeline_mode=w_mode)
    else:
        w_spec = pl.BlockSpec((H_pad, TN), lambda j, i: (0, j))

    out_pad = pl.pallas_call(
        _matmul_bias_kernel,
        out_shape=jax.ShapeDtypeStruct((N, C_pad), compute_dtype),
        grid=(num_col_tiles, num_tiles),           # col tiles outer, rows inner
        in_specs=[
            pl.BlockSpec((TR, H_pad), lambda j, i: (i, 0)),
            w_spec,
            pl.BlockSpec((1, TN), lambda j, i: (0, j)),
        ],
        out_specs=pl.BlockSpec((TR, TN), lambda j, i: (i, j)),
        compiler_params=pltpu.CompilerParams(
            dimension_semantics=("parallel", "parallel"),
            vmem_limit_bytes=vmem_limit),
    )(x2d, w_fold, b_fold)

    # TODO(synk): the C_pad->C slice + f32 cast is one extra XLA copy of the
    # true-sized output; a fused consumer could read the padded bf16 slab.
    return out_pad[:, :C].astype(out_dtype).reshape(L, B, C)


# ---------------------------------------------------------------------------
# Pure-JAX f32 reference (exact module semantics) for the numeric check.
# ---------------------------------------------------------------------------
def dense_layer_ref(padded_output, gamma, beta, w_fc, eps=1e-5):
    L, B, H = padded_output.shape
    x = padded_output.reshape(L * B, H)
    mean = jnp.mean(x, axis=0, keepdims=True)
    var = jnp.mean(jnp.square(x - mean), axis=0, keepdims=True)   # biased
    y = (x - mean) * jax.lax.rsqrt(var + eps)
    y = y * gamma[None, :] + beta[None, :]
    return (y @ w_fc).reshape(L, B, -1)


# ---------------------------------------------------------------------------
if __name__ == "__main__":
    L, B = 8, 4                 # padded_output is [L, B, input_size]
    input_size = 32
    output_size = 11

    key = jax.random.PRNGKey(0)
    k_x, k_w, k_g, k_b = jax.random.split(key, 4)

    padded_output = jax.random.normal(k_x, (L, B, input_size), jnp.float32)
    kw = 1.0 / np.sqrt(input_size)
    w_fc = jax.random.uniform(k_w, (input_size, output_size), jnp.float32, -kw, kw)
    # exercise the BN affine (module default would be gamma=1, beta=0)
    gamma = 1.0 + 0.1 * jax.random.normal(k_g, (input_size,), jnp.float32)
    beta = 0.1 * jax.random.normal(k_b, (input_size,), jnp.float32)

    out = jax.block_until_ready(
        dense_layer_forward(padded_output, gamma, beta, w_fc))
    assert out.shape == (L, B, output_size)

    ref = jax.block_until_ready(dense_layer_ref(padded_output, gamma, beta, w_fc))
    # tolerance accounts for the bf16 x / folded-bf16 weight MXU path and the
    # bf16 padded store (statistics, fold and accumulation are all f32)
    np.testing.assert_allclose(np.asarray(out), np.asarray(ref),
                               rtol=2e-2, atol=2e-2)

    # TODO(synk): BatchNorm1d's running_mean/running_var buffer update (a
    # training-time side effect) is not materialized; the forward output does
    # not depend on it.
    print("KERNEL_OK")
</pallas_src>

<mosaic_0001>
module attributes {stable_mosaic.version = 11 : i64} {
  func.func @_bn_stats_kernel(%arg0: i32, %arg1: i32, %arg2: memref<32x32xbf16, #tpu.memory_space<vmem>>, %arg3: memref<1x1x32xf32, #tpu.memory_space<vmem>>, %arg4: memref<1x1x32xf32, #tpu.memory_space<vmem>>) attributes {dimension_semantics = [#tpu.dimension_semantics<parallel>, #tpu.dimension_semantics<arbitrary>], iteration_bounds = array<i64: 2, 1>, scalar_prefetch = 0 : i64, scratch_operands = 0 : i64, tpu.core_type = #tpu.core_type<tc>, window_params = [{transform_indices = @transform_0, window_bounds = array<i64: 32, 32>}, {transform_indices = @transform_1, window_bounds = array<i64: 1, 1, 32>}, {transform_indices = @transform_2, window_bounds = array<i64: 1, 1, 32>}]} {
    %c0_i32 = arith.constant 0 : i32
    %0 = arith.cmpi eq, %arg1, %c0_i32 : i32
    %1 = arith.extui %0 : i1 to i32
    %c0_i32_0 = arith.constant 0 : i32
    %2 = arith.cmpi ne, %1, %c0_i32_0 : i32
    scf.if %2 {
      %cst_17 = arith.constant 0.000000e+00 : f32
      %34 = vector.broadcast %cst_17 : f32 to vector<1x32xf32>
      %c0_18 = arith.constant 0 : index
      %c0_19 = arith.constant 0 : index
      %c0_20 = arith.constant 0 : index
      %35 = vector.load %arg3[%c0_18, %c0_19, %c0_20] : memref<1x1x32xf32, #tpu.memory_space<vmem>>, vector<1x1x32xf32>
      %36 = vector.shape_cast %35 : vector<1x1x32xf32> to vector<1x32xf32>
      %37 = vector.shape_cast %34 : vector<1x32xf32> to vector<1x1x32xf32>
      tpu.vector_store %arg3[%c0_18, %c0_19, %c0_20], %37 {strides = array<i32>} : memref<1x1x32xf32, #tpu.memory_space<vmem>>, vector<1x1x32xf32>,
      %cst_21 = arith.constant 0.000000e+00 : f32
      %38 = vector.broadcast %cst_21 : f32 to vector<1x32xf32>
      %c0_22 = arith.constant 0 : index
      %c0_23 = arith.constant 0 : index
      %c0_24 = arith.constant 0 : index
      %39 = vector.load %arg4[%c0_22, %c0_23, %c0_24] : memref<1x1x32xf32, #tpu.memory_space<vmem>>, vector<1x1x32xf32>
      %40 = vector.shape_cast %39 : vector<1x1x32xf32> to vector<1x32xf32>
      %41 = vector.shape_cast %38 : vector<1x32xf32> to vector<1x1x32xf32>
      tpu.vector_store %arg4[%c0_22, %c0_23, %c0_24], %41 {strides = array<i32>} : memref<1x1x32xf32, #tpu.memory_space<vmem>>, vector<1x1x32xf32>,
    } else {
    }
    %c0 = arith.constant 0 : index
    %c0_1 = arith.constant 0 : index
    %3 = vector.load %arg2[%c0, %c0_1] : memref<32x32xbf16, #tpu.memory_space<vmem>>, vector<32x32xbf16>
    %4 = arith.extf %3 : vector<32x32xbf16> to vector<32x32xf32>
    %c1_i32 = arith.constant 1 : i32
    %5 = arith.muli %arg0, %c1_i32 : i32
    %6 = arith.addi %5, %arg1 : i32
    %c32_i32 = arith.constant 32 : i32
    %7 = arith.muli %6, %c32_i32 : i32
    %8 = tpu.iota {dimensions = array<i32: 0>} : vector<32x1xi32>
    %9 = vector.broadcast %7 : i32 to vector<32x1xi32>
    %10 = arith.addi %9, %8 : vector<32x1xi32>
    %c32_i32_2 = arith.constant 32 : i32
    %11 = vector.broadcast %c32_i32_2 : i32 to vector<32x1xi32>
    %12 = arith.cmpi slt, %10, %11 : vector<32x1xi32>
    %cst = arith.constant 0.000000e+00 : f32
    %13 = vector.shape_cast %12 : vector<32x1xi1> to vector<32x1xi1>
    %14 = vector.broadcast %13 : vector<32x1xi1> to vector<32x32xi1>
    %15 = vector.broadcast %cst : f32 to vector<32x32xf32>
    %16 = arith.select %14, %4, %15 : vector<32x32xi1>, vector<32x32xf32>
    %c0_3 = arith.constant 0 : index
    %c0_4 = arith.constant 0 : index
    %c0_5 = arith.constant 0 : index
    %17 = vector.load %arg3[%c0_3, %c0_4, %c0_5] : memref<1x1x32xf32, #tpu.memory_space<vmem>>, vector<1x1x32xf32>
    %18 = vector.shape_cast %17 : vector<1x1x32xf32> to vector<1x32xf32>
    %cst_6 = arith.constant dense<0.000000e+00> : vector<32xf32>
    %19 = vector.multi_reduction <add>, %16, %cst_6 [0] : vector<32x32xf32> to vector<32xf32>
    %20 = vector.shape_cast %19 : vector<32xf32> to vector<1x32xf32>
    %21 = arith.addf %18, %20 : vector<1x32xf32>
    %c0_7 = arith.constant 0 : index
    %c0_8 = arith.constant 0 : index
    %c0_9 = arith.constant 0 : index
    %22 = vector.load %arg3[%c0_7, %c0_8, %c0_9] : memref<1x1x32xf32, #tpu.memory_space<vmem>>, vector<1x1x32xf32>
    %23 = vector.shape_cast %22 : vector<1x1x32xf32> to vector<1x32xf32>
    %24 = vector.shape_cast %21 : vector<1x32xf32> to vector<1x1x32xf32>
    tpu.vector_store %arg3[%c0_7, %c0_8, %c0_9], %24 {strides = array<i32>} : memref<1x1x32xf32, #tpu.memory_space<vmem>>, vector<1x1x32xf32>,
    %c0_10 = arith.constant 0 : index
    %c0_11 = arith.constant 0 : index
    %c0_12 = arith.constant 0 : index
    %25 = vector.load %arg4[%c0_10, %c0_11, %c0_12] : memref<1x1x32xf32, #tpu.memory_space<vmem>>, vector<1x1x32xf32>
    %26 = vector.shape_cast %25 : vector<1x1x32xf32> to vector<1x32xf32>
    %27 = arith.mulf %16, %16 : vector<32x32xf32>
    %cst_13 = arith.constant dense<0.000000e+00> : vector<32xf32>
    %28 = vector.multi_reduction <add>, %27, %cst_13 [0] : vector<32x32xf32> to vector<32xf32>
    %29 = vector.shape_cast %28 : vector<32xf32> to vector<1x32xf32>
    %30 = arith.addf %26, %29 : vector<1x32xf32>
    %c0_14 = arith.constant 0 : index
    %c0_15 = arith.constant 0 : index
    %c0_16 = arith.constant 0 : index
    %31 = vector.load %arg4[%c0_14, %c0_15, %c0_16] : memref<1x1x32xf32, #tpu.memory_space<vmem>>, vector<1x1x32xf32>
    %32 = vector.shape_cast %31 : vector<1x1x32xf32> to vector<1x32xf32>
    %33 = vector.shape_cast %30 : vector<1x32xf32> to vector<1x1x32xf32>
    tpu.vector_store %arg4[%c0_14, %c0_15, %c0_16], %33 {strides = array<i32>} : memref<1x1x32xf32, #tpu.memory_space<vmem>>, vector<1x1x32xf32>,
    return
  }
  func.func @transform_0(%arg0: i32, %arg1: i32) -> (i32, i32) {
    %c1_i32 = arith.constant 1 : i32
    %0 = arith.muli %arg0, %c1_i32 : i32
    %1 = arith.addi %0, %arg1 : i32
    %c0_i32 = arith.constant 0 : i32
    %2 = arith.minsi %1, %c0_i32 : i32
    %c0_i32_0 = arith.constant 0 : i32
    %c0_i32_1 = arith.constant 0 : i32
    return %2, %c0_i32_0 : i32, i32
  }
  func.func @transform_1(%arg0: i32, %arg1: i32) -> (i32, i32, i32) {
    %c0_i32 = arith.constant 0 : i32
    %c0_i32_0 = arith.constant 0 : i32
    %c0_i32_1 = arith.constant 0 : i32
    return %arg0, %c0_i32, %c0_i32_0 : i32, i32, i32
  }
  func.func @transform_2(%arg0: i32, %arg1: i32) -> (i32, i32, i32) {
    %c0_i32 = arith.constant 0 : i32
    %c0_i32_0 = arith.constant 0 : i32
    %c0_i32_1 = arith.constant 0 : i32
    return %arg0, %c0_i32, %c0_i32_0 : i32, i32, i32
  }
}

</mosaic_0001>

<llo_original>
// kernel: tpu_custom_call.1
$region0: #{tpu_custom_call.1}
  #allocation0 [shape = 'u32[]', space=smem, size = 0x4, offset = 0x4, fixed_abs, tag = 'smem constant byte address 0x4 - core index']
  #allocation1 [shape = 'u32[72,128]{1,0:T(1,128)}', space=vmem, size = 0x9000, scoped, tag = 'internal scratch']
  %s0 = inlined_call_operand.hbm [shape: bf16[32,32], index: 0, kind: input, shape index: {}]
  %s1 = inlined_call_operand.hbm [shape: f32[2,1,32], index: 1, kind: output, shape index: {0}]
  %s2 = inlined_call_operand.hbm [shape: f32[2,1,32], index: 2, kind: output, shape index: {1}]
  %3 = xla_tuple %s1, %s2
  %s4 = sld [smem:[#allocation0]]
  $region53: #{tpu_custom_call.1} parent=0
    _
  %s6 = ssub.s32 1, %s4
  %s7 = scalar_select 0, %s6, %s4
  $region1: #{tpu_custom_call.1} parent=0
    #allocation2 [shape = 'u8[16384]{0}', space=vmem, size = 0x4000, scoped, tag = 'input window, operand 0']
    #allocation3 [shape = 's32[2]{0}', space=sflag, size = 0x8, scoped, tag = 'scoped memory for tpu_custom_call.1']
    #allocation4 [shape = 's32[2]{0}', space=sflag, size = 0x8, scoped, tag = 'scoped memory for tpu_custom_call.1']
    #allocation5 [shape = 'u8[1024]{0}', space=vmem, size = 0x400, scoped, tag = 'output window, operand 0']
    #allocation6 [shape = 'u8[1024]{0}', space=vmem, size = 0x400, scoped, tag = 'output window, operand 1']
    #allocation7 [shape = 's32[2]{0}', space=sflag, size = 0x8, scoped, tag = 'scoped memory for tpu_custom_call.1']
    %8 = vsyncpa [#allocation3], 0
    %s9 = scalar_lea.sflag [#allocation3], 1
    %10 = vsyncpa %s9, 0
    %11 = vsyncpa [#allocation4], 0
    %s12 = scalar_lea.sflag [#allocation4], 1
    %13 = vsyncpa %s12, 0
    %14 = vsyncpa [#allocation7], 0
    %s15 = scalar_lea.sflag [#allocation7], 1
    %16 = vsyncpa %s15, 0
    loop: start=0, step=1, limit=4
    $region2: #{tpu_custom_call.1} parent=1 // loop_pre_header
      _
    $region3: #{tpu_custom_call.1} parent=1 // loop_header
      %s18 = sphi 0, %s22
      %p19 = scmp.ge.s32.totalorder %s18, 4
      %s25 = sphi 0, %s37
      %s26 = sphi 0, %s33
      %s27 = sphi 0, %s25
      %s28 = sphi 0, %s26
      %s29 = sphi 0, %s27
      %s30 = sphi 0, %s28
      %s46 = sphi 0, %s48
      %s49 = sphi 0, %s46
      %s50 = sphi 0, %s49
      %s66 = sphi 0, %s50
      %s72 = sphi 0, %s74
      %s75 = sphi 0, %s72
      %s76 = sphi 0, %s75
      %s92 = sphi 0, %s76
      %s98 = sphi 0, %s100
      %s101 = sphi 0, %s98
      %s102 = sphi 0, %s101
      %s118 = sphi 0, %s102
    $region4: #{tpu_custom_call.1} parent=1 // loop_header_branch
      %21 = sbr.rel (%p19) target = $region8
    $region5: #{tpu_custom_call.1} parent=1 // loop_body
      %s23 = ssub.s32 %s18, 1
      %s24 = ssub.s32 %s18, 2
      %s31 = sadd.s32 1, %s26
      %p32 = scmp.ge.s32.totalorder %s31, 1
      %s33 = scalar_select %p32, 0, %s31
      %s34 = sadd.s32 1, %s25
      %s35 = scalar_select %p32, %s34, %s25
      %p36 = scmp.ge.s32.totalorder %s35, 2
      %s37 = scalar_select %p36, 0, %s35
      %s38 = sadd.s32 %s25, %s26
      %p39 = scmp.lt.s32.totalorder %s38, 0
      %s40 = scalar_select %p39, %s38, 0
      %s41 = sadd.s32 %s37, %s33
      %p42 = scmp.lt.s32.totalorder %s41, 0
      %s43 = scalar_select %p42, %s41, 0
      %s44 = ssub.s32 %s40, %s43
      %p45 = scmp.eq.s32.totalorder %s44, 0
      %s47 = sadd.s32 %s46, 1
      %s48 = scalar_select %p45, %s46, %s47
      %p51 = pneg %p45
      %p52 = scmp.eq.s32.totalorder %s18, 1
      %p53 = por %p51, %p52
      %p54 = scmp.ne.s32.totalorder %s46, %s49
      %p55 = scmp.eq.s32.totalorder %s18, 0
      %p56 = por %p54, %p55
      %p57 = scmp.ne.s32.totalorder %s46, %s49
      %p58 = scmp.eq.s32.totalorder %s23, 1
      %p59 = por %p57, %p58
      %p60 = scmp.ne.s32.totalorder %s49, %s50
      %p61 = scmp.eq.s32.totalorder %s23, 0
      %p62 = por %p60, %p61
      %p63 = scmp.ne.s32.totalorder %s49, %s50
      %p64 = scmp.eq.s32.totalorder %s24, 1
      %p65 = por %p63, %p64
      %p67 = scmp.ne.s32.totalorder %s50, %s66
      %p68 = scmp.eq.s32.totalorder %s24, 0
      %p69 = por %p67, %p68
      %s70 = ssub.s32 %s25, %s37
      %p71 = scmp.eq.s32.totalorder %s70, 0
      %s73 = sadd.s32 %s72, 1
      %s74 = scalar_select %p71, %s72, %s73
      %p77 = pneg %p71
      %p78 = scmp.eq.s32.totalorder %s18, 1
      %p79 = por %p77, %p78
      %p80 = scmp.ne.s32.totalorder %s72, %s75
      %p81 = scmp.eq.s32.totalorder %s18, 0
      %p82 = por %p80, %p81
      %p83 = scmp.ne.s32.totalorder %s72, %s75
      %p84 = scmp.eq.s32.totalorder %s23, 1
      %p85 = por %p83, %p84
      %p86 = scmp.ne.s32.totalorder %s75, %s76
      %p87 = scmp.eq.s32.totalorder %s23, 0
      %p88 = por %p86, %p87
      %p89 = scmp.ne.s32.totalorder %s75, %s76
      %p90 = scmp.eq.s32.totalorder %s24, 1
      %p91 = por %p89, %p90
      %p93 = scmp.ne.s32.totalorder %s76, %s92
      %p94 = scmp.eq.s32.totalorder %s24, 0
      %p95 = por %p93, %p94
      %s96 = ssub.s32 %s25, %s37
      %p97 = scmp.eq.s32.totalorder %s96, 0
      %s99 = sadd.s32 %s98, 1
      %s100 = scalar_select %p97, %s98, %s99
      %p103 = pneg %p97
      %p104 = scmp.eq.s32.totalorder %s18, 1
      %p105 = por %p103, %p104
      %p106 = scmp.ne.s32.totalorder %s98, %s101
      %p107 = scmp.eq.s32.totalorder %s18, 0
      %p108 = por %p106, %p107
      %p109 = scmp.ne.s32.totalorder %s98, %s101
      %p110 = scmp.eq.s32.totalorder %s23, 1
      %p111 = por %p109, %p110
      %p112 = scmp.ne.s32.totalorder %s101, %s102
      %p113 = scmp.eq.s32.totalorder %s23, 0
      %p114 = por %p112, %p113
      %p115 = scmp.ne.s32.totalorder %s101, %s102
      %p116 = scmp.eq.s32.totalorder %s24, 1
      %p117 = por %p115, %p116
      %p119 = scmp.ne.s32.totalorder %s102, %s118
      %p120 = scmp.eq.s32.totalorder %s24, 0
      %p121 = por %p119, %p120
      %p122 = scmp.le.s32.totalorder 1, %s18
      %p123 = scmp.lt.s32.totalorder %s18, 3
      %p124 = pnand %p122, %p123
      %p125 = pneg %p124
      // Predicated region
      $region9: #{tpu_custom_call.1} parent=5 // pred_check
        _
      $region10: #{tpu_custom_call.1} parent=5 // pred_check_branch
        %127 = sbr.rel (%p124) target = $region12
      $region11: #{tpu_custom_call.1} parent=5 // pred_region
        %s128 = ssub.s32 %s18, 1
      $region12: #{tpu_custom_call.1} parent=5 // pred_fallthru
        _
      %p129 = scmp.lt.s32.totalorder %s18, 2
      // Predicated region
      $region13: #{tpu_custom_call.1} parent=5 // pred_check
        %p130 = pneg %p129
      $region14: #{tpu_custom_call.1} parent=5 // pred_check_branch
        %132 = sbr.rel (%p130) target = $region16
      $region15: #{tpu_custom_call.1} parent=5 // pred_region
        // Predicated region
        $region17: #{tpu_custom_call.1} parent=15 // pred_check
          %p133 = pneg %p56
        $region18: #{tpu_custom_call.1} parent=15 // pred_check_branch
          %135 = sbr.rel (%p133) target = $region20
        $region19: #{tpu_custom_call.1} parent=15 // pred_region
          %s136 = sand.u32 %s46, 1
          %s137 = scalar_lea.sflag [#allocation3], %s136
          %s138 = sand.u32 %s46, 1
          %s139 = smul.addr %s138, 16
          %s140 = scalar_lea.vmem [#allocation2], %s139
          %s141 = sadd.s32 %s25, %s26
          %p142 = scmp.lt.s32.totalorder %s141, 0
          %s143 = scalar_select %p142, %s141, 0
          %s144 = smul.u32 4, %s143
          %146 = vsyncadd %s137, 0
          %s147 = smul.addr %s144, 4
          %s148 = scalar_lea.hbm %s0, %s147
          %s149 = sshll.u32 %s148, 4
          %s150 = int_to_ptr.hbm [resolvable:$true] %s149
          %s151 = sshll.u32 %s140, 4
          %s152 = int_to_ptr.vmem [resolvable:$true] %s151
          %157 = dma.hbm_to_vmem [thread:$0]  %s150, 256, %s152, %s137, 64, 64, 4
        $region20: #{tpu_custom_call.1} parent=15 // pred_fallthru
          _
      $region16: #{tpu_custom_call.1} parent=5 // pred_fallthru
        _
      %p158 = scmp.le.s32.totalorder 1, %s18
      %p159 = scmp.lt.s32.totalorder %s18, 3
      %p160 = pnand %p158, %p159
      %p161 = pneg %p160
      // Predicated region
      $region21: #{tpu_custom_call.1} parent=5 // pred_check
        _
      $region22: #{tpu_custom_call.1} parent=5 // pred_check_branch
        %163 = sbr.rel (%p160) target = $region24
      $region23: #{tpu_custom_call.1} parent=5 // pred_region
        %s164 = ssub.s32 %s18, 1
        %s165 = sand.u32 %s49, 1
        %s166 = scalar_lea.sflag [#allocation3], %s165
        %s167 = sand.u32 %s49, 1
        %s168 = smul.addr %s167, 16
        %s169 = scalar_lea.vmem [#allocation2], %s168
        // Predicated region
        $region25: #{tpu_custom_call.1} parent=23 // pred_check
          %p170 = pneg %p62
        $region26: #{tpu_custom_call.1} parent=23 // pred_check_branch
          %172 = sbr.rel (%p170) target = $region28
        $region27: #{tpu_custom_call.1} parent=23 // pred_region
          %174 = dma.done %s166, 256
        $region28: #{tpu_custom_call.1} parent=23 // pred_fallthru
          _
        %s175 = sand.u32 %s49, 1
        %s176 = scalar_lea.sflag [#allocation3], %s175
        %s177 = sand.u32 %s49, 1
        %s178 = smul.addr %s177, 16
        %s179 = scalar_lea.vmem [#allocation2], %s178
        %p180 = pneg %p62
        %p181 = pneg %p59
        %p182 = pneg %p88
        %p183 = pneg %p85
        %s184 = sand.u32 %s75, 1
        %s185 = scalar_lea.sflag [#allocation4], %s184
        %s186 = sand.u32 %s75, 1
        %s187 = scalar_lea.vmem [#allocation5], %s186
        %p188 = pneg %p114
        %p189 = pneg %p111
        %s190 = sand.u32 %s101, 1
        %s191 = scalar_lea.sflag [#allocation7], %s190
        %s192 = sand.u32 %s101, 1
        %s193 = scalar_lea.vmem [#allocation6], %s192
        %s194 = sadd.s32 %s27, %s28
        %p195 = scmp.lt.s32.totalorder %s194, 0
        %s196 = scalar_select %p195, %s194, 0
        %s197 = smul.u32 4, %s196
        %p198 = scmp.eq.s32.totalorder %s28, 0
        // Predicated region
        $region29: #{tpu_custom_call.1} parent=23 // pred_check
          %p199 = pneg %p198
        $region30: #{tpu_custom_call.1} parent=23 // pred_check_branch
          %201 = sbr.rel (%p199) target = $region32
        $region31: #{tpu_custom_call.1} parent=23 // pred_region
          %vm202 = vcmask 253952
          %203 = vst.msk [vmem:[%s187] sm:$0x1] %vm202, 0.0
          %204 = vst.msk [vmem:[%s193] sm:$0x1] %vm202, 0.0
        $region32: #{tpu_custom_call.1} parent=23 // pred_fallthru
          _
        %v205 = vld [vmem:[%s169] sm:$0xf]
        %v206 = vld [vmem:[%s169 + $0x4] sm:$0xf]
        %v207 = vld [vmem:[%s169 + $0x8] sm:$0xf]
        %v208 = vld [vmem:[%s169 + $0xc] sm:$0xf]
        %v209 = vunpack.c.l.bf16 %v205
        %v210 = vunpack.c.l.bf16 %v206
        %v211 = vunpack.c.l.bf16 %v207
        %v212 = vunpack.c.l.bf16 %v208
        %s213 = sadd.s32 %s27, %s28
        %s214 = smul.u32 %s213, 32
        %v215 = vlaneseq
        %v216 = vshrl.u32 %v215, 7
        %v217 = vadd.s32 %v216, 8
        %v218 = vadd.s32 %v216, 16
        %v219 = vadd.s32 %v216, 24
        %v220 = vstv %s214
        %v221 = vadd.s32 %v220, %v216
        %v222 = vadd.s32 %v220, %v217
        %v223 = vadd.s32 %v220, %v218
        %v224 = vadd.s32 %v220, %v219
        %vm225 = vcmp.lt.s32.totalorder %v221, 32
        %vm226 = vcmp.lt.s32.totalorder %v222, 32
        %vm227 = vcmp.lt.s32.totalorder %v223, 32
        %vm228 = vcmp.lt.s32.totalorder %v224, 32
        %v229 = vsel %vm225, 1, 0
        %v230 = vsel %vm226, 1, 0
        %v231 = vsel %vm227, 1, 0
        %v232 = vsel %vm228, 1, 0
        %vm233 = vcmp.eq.s32.totalorder %v229, 1
        %vm234 = vcmp.eq.s32.totalorder %v230, 1
        %vm235 = vcmp.eq.s32.totalorder %v231, 1
        %vm236 = vcmp.eq.s32.totalorder %v232, 1
        %v237 = vsel %vm233, %v209, 0.0
        %v238 = vsel %vm234, %v210, 0.0
        %v239 = vsel %vm235, %v211, 0.0
        %v240 = vsel %vm236, %v212, 0.0
        %v241 = vld [vmem:[%s187] sm:$0x1]
        %vm242 = vcmask 261120
        %v243 = vsel %vm242, %v237, 0.0
        %v244 = vsel %vm242, %v238, 0.0
        %v245 = vadd.f32 %v243, %v244
        %v246 = vsel %vm242, %v239, 0.0
        %v247 = vadd.f32 %v245, %v246
        %v248 = vsel %vm242, %v240, 0.0
        %v249 = vadd.f32 %v247, %v248
        %v250 = vrot.slane %v249, 4
        %v251 = vadd.f32 %v249, %v250
        %v252 = vrot.slane %v251, 2
        %v253 = vadd.f32 %v251, %v252
        %v254 = vrot.slane %v253, 1
        %v255 = vadd.f32 %v253, %v254
        %v256 = vadd.f32 %v241, %v255
        %vm257 = vcmask 253952
        %258 = vst.msk [vmem:[%s187] sm:$0x1] %vm257, %v256
        %v259 = vld [vmem:[%s193] sm:$0x1]
        %v260 = vmul.f32 %v237, %v237
        %v261 = vmul.f32 %v238, %v238
        %v262 = vmul.f32 %v239, %v239
        %v263 = vmul.f32 %v240, %v240
        %v264 = vsel %vm242, %v260, 0.0
        %v265 = vsel %vm242, %v261, 0.0
        %v266 = vadd.f32 %v264, %v265
        %v267 = vsel %vm242, %v262, 0.0
        %v268 = vadd.f32 %v266, %v267
        %v269 = vsel %vm242, %v263, 0.0
        %v270 = vadd.f32 %v268, %v269
        %v271 = vrot.slane %v270, 4
        %v272 = vadd.f32 %v270, %v271
        %v273 = vrot.slane %v272, 2
        %v274 = vadd.f32 %v272, %v273
        %v275 = vrot.slane %v274, 1
        %v276 = vadd.f32 %v274, %v275
        %v277 = vadd.f32 %v259, %v276
        %278 = vst.msk [vmem:[%s193] sm:$0x1] %vm257, %v277
        %s279 = sand.u32 %s75, 1
        %s280 = scalar_lea.sflag [#allocation4], %s279
        %s281 = sand.u32 %s75, 1
        %s282 = scalar_lea.vmem [#allocation5], %s281
        %s283 = sand.u32 %s101, 1
        %s284 = scalar_lea.sflag [#allocation7], %s283
        %s285 = sand.u32 %s101, 1
        %s286 = scalar_lea.vmem [#allocation6], %s285
        // Predicated region
        $region33: #{tpu_custom_call.1} parent=23 // pred_check
          %p287 = pneg %p85
        $region34: #{tpu_custom_call.1} parent=23 // pred_check_branch
          %289 = sbr.rel (%p287) target = $region36
        $region35: #{tpu_custom_call.1} parent=23 // pred_region
          %291 = vsyncadd %s280, 0
          %s292 = scalar_lea.hbm %s1, %s27
          %s294 = sshll.u32 %s282, 4
          %s295 = int_to_ptr.vmem [resolvable:$true] %s294
          %s296 = sshll.u32 %s292, 4
          %s297 = int_to_ptr.hbm [resolvable:$true] %s296
          %299 = dma.vmem_to_hbm [thread:$0]  %s295, 16, %s297, %s280
        $region36: #{tpu_custom_call.1} parent=23 // pred_fallthru
          _
        // Predicated region
        $region37: #{tpu_custom_call.1} parent=23 // pred_check
          %p300 = pneg %p111
        $region38: #{tpu_custom_call.1} parent=23 // pred_check_branch
          %302 = sbr.rel (%p300) target = $region40
        $region39: #{tpu_custom_call.1} parent=23 // pred_region
          %304 = vsyncadd %s284, 0
          %s305 = scalar_lea.hbm %s2, %s27
          %s307 = sshll.u32 %s286, 4
          %s308 = int_to_ptr.vmem [resolvable:$true] %s307
          %s309 = sshll.u32 %s305, 4
          %s310 = int_to_ptr.hbm [resolvable:$true] %s309
          %312 = dma.vmem_to_hbm [thread:$0]  %s308, 16, %s310, %s284
        $region40: #{tpu_custom_call.1} parent=23 // pred_fallthru
          _
      $region24: #{tpu_custom_call.1} parent=5 // pred_fallthru
        _
      %p313 = scmp.le.s32.totalorder 2, %s18
      // Predicated region
      $region41: #{tpu_custom_call.1} parent=5 // pred_check
        %p314 = pneg %p313
      $region42: #{tpu_custom_call.1} parent=5 // pred_check_branch
        %316 = sbr.rel (%p314) target = $region44
      $region43: #{tpu_custom_call.1} parent=5 // pred_region
        %s317 = ssub.s32 %s18, 2
        // Predicated region
        $region45: #{tpu_custom_call.1} parent=43 // pred_check
          %p318 = pneg %p91
        $region46: #{tpu_custom_call.1} parent=43 // pred_check_branch
          %320 = sbr.rel (%p318) target = $region48
        $region47: #{tpu_custom_call.1} parent=43 // pred_region
          %s321 = sand.u32 %s76, 1
          %s322 = scalar_lea.sflag [#allocation4], %s321
          %s323 = sand.u32 %s76, 1
          %s324 = scalar_lea.vmem [#allocation5], %s323
          %326 = dma.done %s322, 16
        $region48: #{tpu_custom_call.1} parent=43 // pred_fallthru
          _
        // Predicated region
        $region49: #{tpu_custom_call.1} parent=43 // pred_check
          %p327 = pneg %p117
        $region50: #{tpu_custom_call.1} parent=43 // pred_check_branch
          %329 = sbr.rel (%p327) target = $region52
        $region51: #{tpu_custom_call.1} parent=43 // pred_region
          %s330 = sand.u32 %s102, 1
          %s331 = scalar_lea.sflag [#allocation7], %s330
          %s332 = sand.u32 %s102, 1
          %s333 = scalar_lea.vmem [#allocation6], %s332
          %335 = dma.done %s331, 16
        $region52: #{tpu_custom_call.1} parent=43 // pred_fallthru
          _
      $region44: #{tpu_custom_call.1} parent=5 // pred_fallthru
        _
    $region6: #{tpu_custom_call.1} parent=1 // loop_footer
      %s22 = sadd.s32 1, %s18
    $region7: #{tpu_custom_call.1} parent=1 // loop_footer_branch
      %17 = sbr.rel target = $region3
    $region8: #{tpu_custom_call.1} parent=1 // loop_exit
      _
    %336 = vsyncpa [#allocation3], 1
    %s337 = scalar_lea.sflag [#allocation3], 1
    %338 = vsyncpa %s337, 1
    %339 = vsyncpa [#allocation4], 1
    %s340 = scalar_lea.sflag [#allocation4], 1
    %341 = vsyncpa %s340, 1
    %342 = vsyncpa [#allocation7], 1
    %s343 = scalar_lea.sflag [#allocation7], 1
    %344 = vsyncpa %s343, 1

</llo_original>
